<compile_context>
chip_gen: v5e
topology: v5e:2x2
jax: 0.10.0
libtpu: 0.0.40
codegen_flags: <defaults>
</compile_context>

<pallas_src>
import functools
import math

import jax
import jax.numpy as jnp
from jax.experimental import pallas as pl
from jax.experimental.pallas import tpu as pltpu


_HALF_LOG_2PI = 0.5 * math.log(2.0 * math.pi)


def _round_up(v, m):
    return (v + m - 1) // m * m


def _softplus(x):
    # numerically stable softplus (VPU + one exp/log on the EUP)
    return jnp.maximum(x, 0.0) + jnp.log(1.0 + jnp.exp(-jnp.abs(x)))


def _lgamma(z):
    # Valid for z >= 1 (guaranteed: alpha, beta = softplus(.) + 1).
    # Shift by 7 then Stirling series: lgamma(z) = lgamma(z+7) - log(prod).
    # Error < 3e-10 for w >= 8.  One (approx) reciprocal instead of 8 divides.
    p = z * (z + 1.0) * (z + 2.0) * (z + 3.0) * (z + 4.0) * (z + 5.0) * (z + 6.0)
    w = z + 7.0
    r = pl.reciprocal(w, approx=True)           # correction term is O(1e-2)
    r2 = r * r
    series = r * (1.0 / 12.0 - r2 * (1.0 / 360.0 - r2 * (1.0 / 1260.0)))
    return (w - 0.5) * jnp.log(w) - w + _HALF_LOG_2PI + series - jnp.log(p)


def _digamma(z):
    # Valid for z >= 1.  Recurrence-shift by 6 with pairwise-combined terms
    # (3 divides instead of 6), then asymptotic series (error < 1e-9, w >= 7).
    acc = ((2.0 * z + 1.0) / (z * (z + 1.0))
           + (2.0 * z + 5.0) / ((z + 2.0) * (z + 3.0))
           + (2.0 * z + 9.0) / ((z + 4.0) * (z + 5.0)))
    w = z + 6.0
    r = pl.reciprocal(w, approx=True)
    r2 = r * r
    psi = (jnp.log(w) - 0.5 * r
           - r2 * (1.0 / 12.0 - r2 * (1.0 / 120.0 - r2 * (1.0 / 252.0))))
    return psi - acc


def _policy_kernel(x_ref, act_ref,
                   w1_ref, b1_ref, w2_ref, b2_ref, w3_ref, b3_ref,
                   out_ref, *, action_dim):
    A = action_dim

    # ---- fused actor||critic trunk: 3 lane-dense bf16 matmuls, f32 accum ----
    x = x_ref[...].astype(jnp.bfloat16)                         # (TB, D)
    h = jnp.dot(x, w1_ref[...], preferred_element_type=jnp.float32) + b1_ref[...]
    h = jnp.maximum(h, 0.0)                                     # (TB, 2H) = [actor | critic]
    h = jnp.dot(h.astype(jnp.bfloat16), w2_ref[...],
                preferred_element_type=jnp.float32) + b2_ref[...]
    h = jnp.maximum(h, 0.0)
    h3 = jnp.dot(h.astype(jnp.bfloat16), w3_ref[...],
                 preferred_element_type=jnp.float32) + b3_ref[...]   # (TB, 2A+1)

    # ---- heads: [alpha | beta] packed in one array, value from critic half ----
    ab = _softplus(h3[:, 0:2 * A]) + 1.0                        # (TB, 2A), >= 1
    value = h3[:, 2 * A:2 * A + 1]                              # (TB, 1)

    # ---- Beta log_prob / entropy ----
    a_in = act_ref[...]                                         # (TB, A) in [-1, 1]
    # [log u | log(1-u)] computed directly from the input (no 1-u cancellation)
    log_u_ext = jnp.log(jnp.concatenate(
        [(a_in + 1.0) * 0.5, (1.0 - a_in) * 0.5], axis=-1))     # (TB, 2A)

    s = ab[:, 0:A] + ab[:, A:2 * A]                             # alpha + beta (TB, A)

    lg_ab = _lgamma(ab)                                         # lgamma(alpha|beta)
    lg_s = _lgamma(s)                                           # lgamma(alpha+beta)
    sum_lg_ab = jnp.sum(lg_ab, axis=-1, keepdims=True)
    sum_lg_s = jnp.sum(lg_s, axis=-1, keepdims=True)
    sum_lbeta = sum_lg_ab - sum_lg_s                            # sum_i log B(a_i, b_i)

    logp = jnp.sum((ab - 1.0) * log_u_ext, axis=-1, keepdims=True) - sum_lbeta

    dg_ab = _digamma(ab)
    dg_s = _digamma(s)
    ent = (sum_lbeta
           - jnp.sum((ab - 1.0) * dg_ab, axis=-1, keepdims=True)
           + jnp.sum((s - 2.0) * dg_s, axis=-1, keepdims=True))

    # ---- pack per-row scalars into one lane-dense slab (unmasked stores) ----
    # lane 0 = log_prob, lane 1 = value, lane 2 = entropy, rest zero.
    lane = jax.lax.broadcasted_iota(jnp.int32, out_ref.shape, 1)
    out_ref[...] = jnp.where(lane == 0, logp,
                             jnp.where(lane == 1, value,
                                       jnp.where(lane == 2, ent, 0.0)))


def carla_latent_policy_forward(x, action, fused_params):
    """Returns (action*2-1, action_log_prob, value, entropy) like the PyTorch module."""
    W1, b1, W2, b2, W3, b3 = fused_params
    B, D = x.shape
    A = action.shape[1]

    # Batch tile: 256 rows (fills the MXU M dim) for big batches,
    # sublane-aligned round-up (single grid step) for small ones.
    TB = 256 if B >= 256 else _round_up(B, 8)
    B_pad = _round_up(B, TB)
    if B_pad != B:
        x_p = jnp.zeros((B_pad, D), x.dtype).at[:B].set(x)
        a_p = jnp.zeros((B_pad, A), action.dtype).at[:B].set(action)
    else:
        x_p, a_p = x, action

    out = pl.pallas_call(
        functools.partial(_policy_kernel, action_dim=A),
        out_shape=jax.ShapeDtypeStruct((B_pad, 128), jnp.float32),
        grid=(B_pad // TB,),
        in_specs=[
            pl.BlockSpec((TB, D), lambda i: (i, 0)),       # x tile
            pl.BlockSpec((TB, A), lambda i: (i, 0)),       # action tile
            pl.BlockSpec(W1.shape, lambda i: (0, 0)),      # weights: VMEM-resident
            pl.BlockSpec(b1.shape, lambda i: (0, 0)),
            pl.BlockSpec(W2.shape, lambda i: (0, 0)),
            pl.BlockSpec(b2.shape, lambda i: (0, 0)),
            pl.BlockSpec(W3.shape, lambda i: (0, 0)),
            pl.BlockSpec(b3.shape, lambda i: (0, 0)),
        ],
        out_specs=pl.BlockSpec((TB, 128), lambda i: (i, 0)),
        compiler_params=pltpu.CompilerParams(
            dimension_semantics=("parallel",)),
    )(x_p, a_p, W1, b1, W2, b2, W3, b3)

    log_prob = out[:B, 0]
    value = out[:B, 1]
    entropy = out[:B, 2]
    # returned action = ((a+1)/2)*2 - 1 ; trivial, done in the wrapper.
    action_out = ((action + 1.0) * 0.5) * 2.0 - 1.0
    return action_out, log_prob, value, entropy


def init_params(key, input_dim, action_dim, hidden=(64, 64)):
    """Deterministic PyTorch-style (uniform +/- 1/sqrt(fan_in)) init."""
    keys = jax.random.split(key, 7)

    def lin(k, fan_in, fan_out):
        bound = 1.0 / math.sqrt(fan_in)
        kw, kb = jax.random.split(k)
        W = jax.random.uniform(kw, (fan_in, fan_out), jnp.float32, -bound, bound)
        b = jax.random.uniform(kb, (1, fan_out), jnp.float32, -bound, bound)
        return W, b

    aw1, ab1 = lin(keys[0], input_dim, hidden[0])
    aw2, ab2 = lin(keys[1], hidden[0], hidden[1])
    alw, alb = lin(keys[2], hidden[1], action_dim)
    bew, beb = lin(keys[3], hidden[1], action_dim)
    cw1, cb1 = lin(keys[4], input_dim, hidden[0])
    cw2, cb2 = lin(keys[5], hidden[0], hidden[1])
    cw3, cb3 = lin(keys[6], hidden[1], 1)
    return (aw1, ab1, aw2, ab2, alw, alb, bew, beb,
            cw1, cb1, cw2, cb2, cw3, cb3)


def fuse_params(params, action_dim, hidden=(64, 64)):
    """Host-side fusion: layer-1 concat, block-diag layer-2, fused 3-way head."""
    (aw1, ab1, aw2, ab2, alw, alb, bew, beb,
     cw1, cb1, cw2, cb2, cw3, cb3) = params
    H1, H2 = hidden
    A = action_dim

    W1 = jnp.concatenate([aw1, cw1], axis=1)                 # (D, 2*H1)
    b1 = jnp.concatenate([ab1, cb1], axis=1)                 # (1, 2*H1)

    W2 = jnp.zeros((2 * H1, 2 * H2), jnp.float32)
    W2 = W2.at[:H1, :H2].set(aw2).at[H1:, H2:].set(cw2)      # block-diagonal
    b2 = jnp.concatenate([ab2, cb2], axis=1)                 # (1, 2*H2)

    W3 = jnp.zeros((2 * H2, 2 * A + 1), jnp.float32)
    W3 = (W3.at[:H2, :A].set(alw)                            # alpha head
             .at[:H2, A:2 * A].set(bew)                      # beta head
             .at[H2:, 2 * A:].set(cw3))                      # value head
    b3 = jnp.concatenate([alb, beb, cb3], axis=1)            # (1, 2A+1)

    return (W1.astype(jnp.bfloat16), b1,
            W2.astype(jnp.bfloat16), b2,
            W3.astype(jnp.bfloat16), b3)


def _reference(x, action, fused_params):
    """Pure-JAX reference (same bf16-rounded matmul path, exact gammaln/digamma)."""
    from jax.scipy.special import gammaln, digamma
    W1, b1, W2, b2, W3, b3 = fused_params
    A = action.shape[1]

    def bf16(v):
        return v.astype(jnp.bfloat16).astype(jnp.float32)

    h = jnp.maximum(bf16(x) @ W1.astype(jnp.float32) + b1, 0.0)
    h = jnp.maximum(bf16(h) @ W2.astype(jnp.float32) + b2, 0.0)
    h3 = bf16(h) @ W3.astype(jnp.float32) + b3
    alpha = jax.nn.softplus(h3[:, :A]) + 1.0
    beta = jax.nn.softplus(h3[:, A:2 * A]) + 1.0
    value = h3[:, 2 * A]

    u = (action + 1.0) * 0.5
    lbeta = gammaln(alpha) + gammaln(beta) - gammaln(alpha + beta)
    logp = jnp.sum((alpha - 1.0) * jnp.log(u)
                   + (beta - 1.0) * jnp.log(1.0 - u) - lbeta, axis=-1)
    ent = jnp.sum(lbeta
                  - (alpha - 1.0) * digamma(alpha)
                  - (beta - 1.0) * digamma(beta)
                  + (alpha + beta - 2.0) * digamma(alpha + beta), axis=-1)
    return logp, value, ent


if __name__ == "__main__":
    B, INPUT_DIM, ACTION_DIM = 8, 32, 4

    key = jax.random.PRNGKey(0)
    k_x, k_a, k_p = jax.random.split(key, 3)

    x = jax.random.normal(k_x, (B, INPUT_DIM), dtype=jnp.float32)
    # provided action in [-0.9, 0.9] (the `action is not None` branch)
    action_in = jax.random.uniform(
        k_a, (B, ACTION_DIM), dtype=jnp.float32, minval=-0.9, maxval=0.9)

    params = init_params(k_p, INPUT_DIM, ACTION_DIM)
    fused = fuse_params(params, ACTION_DIM)

    action_out, log_prob, value, entropy = carla_latent_policy_forward(
        x, action_in, fused)
    jax.block_until_ready((action_out, log_prob, value, entropy))

    assert action_out.shape == (B, ACTION_DIM)
    assert log_prob.shape == (B,)
    assert value.shape == (B,)
    assert entropy.shape == (B,)
    assert bool(jnp.all(jnp.isfinite(log_prob)))
    assert bool(jnp.all(jnp.isfinite(value)))
    assert bool(jnp.all(jnp.isfinite(entropy)))

    # correctness vs. a pure-JAX reference (same quantized matmul path)
    ref_logp, ref_value, ref_ent = _reference(x, action_in, fused)
    assert float(jnp.max(jnp.abs(log_prob - ref_logp))) < 2e-2
    assert float(jnp.max(jnp.abs(value - ref_value))) < 2e-2
    assert float(jnp.max(jnp.abs(entropy - ref_ent))) < 2e-2

    print("KERNEL_OK")
</pallas_src>

<mosaic_0001>
module attributes {stable_mosaic.version = 11 : i64} {
  func.func @_policy_kernel(%arg0: i32, %arg1: memref<8x32xf32, #tpu.memory_space<vmem>>, %arg2: memref<8x4xf32, #tpu.memory_space<vmem>>, %arg3: memref<32x128xbf16, #tpu.memory_space<vmem>>, %arg4: memref<1x128xf32, #tpu.memory_space<vmem>>, %arg5: memref<128x128xbf16, #tpu.memory_space<vmem>>, %arg6: memref<1x128xf32, #tpu.memory_space<vmem>>, %arg7: memref<128x9xbf16, #tpu.memory_space<vmem>>, %arg8: memref<1x9xf32, #tpu.memory_space<vmem>>, %arg9: memref<8x128xf32, #tpu.memory_space<vmem>>) attributes {dimension_semantics = [#tpu.dimension_semantics<parallel>], iteration_bounds = array<i64: 1>, scalar_prefetch = 0 : i64, scratch_operands = 0 : i64, tpu.core_type = #tpu.core_type<tc>, window_params = [{transform_indices = @transform_0, window_bounds = array<i64: 8, 32>}, {transform_indices = @transform_1, window_bounds = array<i64: 8, 4>}, {pipeline_mode = #tpu.pipeline_mode<synchronous>, transform_indices = @transform_2, window_bounds = array<i64: 32, 128>}, {pipeline_mode = #tpu.pipeline_mode<synchronous>, transform_indices = @transform_3, window_bounds = array<i64: 1, 128>}, {pipeline_mode = #tpu.pipeline_mode<synchronous>, transform_indices = @transform_4, window_bounds = array<i64: 128, 128>}, {pipeline_mode = #tpu.pipeline_mode<synchronous>, transform_indices = @transform_5, window_bounds = array<i64: 1, 128>}, {pipeline_mode = #tpu.pipeline_mode<synchronous>, transform_indices = @transform_6, window_bounds = array<i64: 128, 9>}, {pipeline_mode = #tpu.pipeline_mode<synchronous>, transform_indices = @transform_7, window_bounds = array<i64: 1, 9>}, {transform_indices = @transform_8, window_bounds = array<i64: 8, 128>}]} {
    %c0 = arith.constant 0 : index
    %c0_0 = arith.constant 0 : index
    %0 = vector.load %arg1[%c0, %c0_0] : memref<8x32xf32, #tpu.memory_space<vmem>>, vector<8x32xf32>
    %1 = arith.truncf %0 : vector<8x32xf32> to vector<8x32xbf16>
    %c0_1 = arith.constant 0 : index
    %c0_2 = arith.constant 0 : index
    %2 = vector.load %arg3[%c0_1, %c0_2] : memref<32x128xbf16, #tpu.memory_space<vmem>>, vector<32x128xbf16>
    %cst = arith.constant dense<0.000000e+00> : vector<8x128xf32>
    %3 = tpu.matmul %1, %2, %cst {dimension_numbers = #tpu.dot_dimension_numbers<[1], [0], [0], [1], [0, 0, 1, 1], [], []>} : vector<8x32xbf16>, vector<32x128xbf16>, vector<8x128xf32> -> vector<8x128xf32>
    %c0_3 = arith.constant 0 : index
    %c0_4 = arith.constant 0 : index
    %4 = vector.load %arg4[%c0_3, %c0_4] : memref<1x128xf32, #tpu.memory_space<vmem>>, vector<1x128xf32>
    %5 = vector.broadcast %4 : vector<1x128xf32> to vector<8x128xf32>
    %6 = arith.addf %3, %5 : vector<8x128xf32>
    %cst_5 = arith.constant 0.000000e+00 : f32
    %7 = vector.broadcast %cst_5 : f32 to vector<8x128xf32>
    %8 = arith.maximumf %6, %7 : vector<8x128xf32>
    %9 = arith.truncf %8 : vector<8x128xf32> to vector<8x128xbf16>
    %c0_6 = arith.constant 0 : index
    %c0_7 = arith.constant 0 : index
    %10 = vector.load %arg5[%c0_6, %c0_7] : memref<128x128xbf16, #tpu.memory_space<vmem>>, vector<128x128xbf16>
    %cst_8 = arith.constant dense<0.000000e+00> : vector<8x128xf32>
    %11 = tpu.matmul %9, %10, %cst_8 {dimension_numbers = #tpu.dot_dimension_numbers<[1], [0], [0], [1], [0, 0, 1, 1], [], []>} : vector<8x128xbf16>, vector<128x128xbf16>, vector<8x128xf32> -> vector<8x128xf32>
    %c0_9 = arith.constant 0 : index
    %c0_10 = arith.constant 0 : index
    %12 = vector.load %arg6[%c0_9, %c0_10] : memref<1x128xf32, #tpu.memory_space<vmem>>, vector<1x128xf32>
    %13 = vector.broadcast %12 : vector<1x128xf32> to vector<8x128xf32>
    %14 = arith.addf %11, %13 : vector<8x128xf32>
    %cst_11 = arith.constant 0.000000e+00 : f32
    %15 = vector.broadcast %cst_11 : f32 to vector<8x128xf32>
    %16 = arith.maximumf %14, %15 : vector<8x128xf32>
    %17 = arith.truncf %16 : vector<8x128xf32> to vector<8x128xbf16>
    %c0_12 = arith.constant 0 : index
    %c0_13 = arith.constant 0 : index
    %18 = vector.load %arg7[%c0_12, %c0_13] : memref<128x9xbf16, #tpu.memory_space<vmem>>, vector<128x9xbf16>
    %cst_14 = arith.constant dense<0.000000e+00> : vector<8x9xf32>
    %19 = tpu.matmul %17, %18, %cst_14 {dimension_numbers = #tpu.dot_dimension_numbers<[1], [0], [0], [1], [0, 0, 1, 1], [], []>} : vector<8x128xbf16>, vector<128x9xbf16>, vector<8x9xf32> -> vector<8x9xf32>
    %c0_15 = arith.constant 0 : index
    %c0_16 = arith.constant 0 : index
    %20 = vector.load %arg8[%c0_15, %c0_16] : memref<1x9xf32, #tpu.memory_space<vmem>>, vector<1x9xf32>
    %21 = vector.broadcast %20 : vector<1x9xf32> to vector<8x9xf32>
    %22 = arith.addf %19, %21 : vector<8x9xf32>
    %23 = vector.extract_strided_slice %22 {offsets = [0, 0], sizes = [8, 8], strides = [1, 1]} : vector<8x9xf32> to vector<8x8xf32>
    %cst_17 = arith.constant 0.000000e+00 : f32
    %24 = vector.broadcast %cst_17 : f32 to vector<8x8xf32>
    %25 = arith.maximumf %23, %24 : vector<8x8xf32>
    %26 = math.absf %23 : vector<8x8xf32>
    %cst_18 = arith.constant 0.000000e+00 : f32
    %27 = vector.broadcast %cst_18 : f32 to vector<8x8xf32>
    %28 = arith.subf %27, %26 : vector<8x8xf32>
    %29 = math.exp %28 : vector<8x8xf32>
    %cst_19 = arith.constant 1.000000e+00 : f32
    %30 = vector.broadcast %cst_19 : f32 to vector<8x8xf32>
    %31 = arith.addf %30, %29 : vector<8x8xf32>
    %32 = math.log %31 : vector<8x8xf32>
    %33 = arith.addf %25, %32 : vector<8x8xf32>
    %cst_20 = arith.constant 1.000000e+00 : f32
    %34 = vector.broadcast %cst_20 : f32 to vector<8x8xf32>
    %35 = arith.addf %33, %34 : vector<8x8xf32>
    %36 = vector.extract_strided_slice %22 {offsets = [0, 8], sizes = [8, 1], strides = [1, 1]} : vector<8x9xf32> to vector<8x1xf32>
    %c0_21 = arith.constant 0 : index
    %c0_22 = arith.constant 0 : index
    %37 = vector.load %arg2[%c0_21, %c0_22] : memref<8x4xf32, #tpu.memory_space<vmem>>, vector<8x4xf32>
    %cst_23 = arith.constant 1.000000e+00 : f32
    %38 = vector.broadcast %cst_23 : f32 to vector<8x4xf32>
    %39 = arith.addf %37, %38 : vector<8x4xf32>
    %cst_24 = arith.constant 5.000000e-01 : f32
    %40 = vector.broadcast %cst_24 : f32 to vector<8x4xf32>
    %41 = arith.mulf %39, %40 : vector<8x4xf32>
    %cst_25 = arith.constant 1.000000e+00 : f32
    %42 = vector.broadcast %cst_25 : f32 to vector<8x4xf32>
    %43 = arith.subf %42, %37 : vector<8x4xf32>
    %cst_26 = arith.constant 5.000000e-01 : f32
    %44 = vector.broadcast %cst_26 : f32 to vector<8x4xf32>
    %45 = arith.mulf %43, %44 : vector<8x4xf32>
    %46 = tpu.concatenate %41, %45 in 1 : vector<8x4xf32>, vector<8x4xf32> -> vector<8x8xf32>
    %47 = math.log %46 : vector<8x8xf32>
    %48 = vector.extract_strided_slice %35 {offsets = [0, 0], sizes = [8, 4], strides = [1, 1]} : vector<8x8xf32> to vector<8x4xf32>
    %49 = vector.extract_strided_slice %35 {offsets = [0, 4], sizes = [8, 4], strides = [1, 1]} : vector<8x8xf32> to vector<8x4xf32>
    %50 = arith.addf %48, %49 : vector<8x4xf32>
    %cst_27 = arith.constant 1.000000e+00 : f32
    %51 = vector.broadcast %cst_27 : f32 to vector<8x8xf32>
    %52 = arith.addf %35, %51 : vector<8x8xf32>
    %53 = arith.mulf %35, %52 : vector<8x8xf32>
    %cst_28 = arith.constant 2.000000e+00 : f32
    %54 = vector.broadcast %cst_28 : f32 to vector<8x8xf32>
    %55 = arith.addf %35, %54 : vector<8x8xf32>
    %56 = arith.mulf %53, %55 : vector<8x8xf32>
    %cst_29 = arith.constant 3.000000e+00 : f32
    %57 = vector.broadcast %cst_29 : f32 to vector<8x8xf32>
    %58 = arith.addf %35, %57 : vector<8x8xf32>
    %59 = arith.mulf %56, %58 : vector<8x8xf32>
    %cst_30 = arith.constant 4.000000e+00 : f32
    %60 = vector.broadcast %cst_30 : f32 to vector<8x8xf32>
    %61 = arith.addf %35, %60 : vector<8x8xf32>
    %62 = arith.mulf %59, %61 : vector<8x8xf32>
    %cst_31 = arith.constant 5.000000e+00 : f32
    %63 = vector.broadcast %cst_31 : f32 to vector<8x8xf32>
    %64 = arith.addf %35, %63 : vector<8x8xf32>
    %65 = arith.mulf %62, %64 : vector<8x8xf32>
    %cst_32 = arith.constant 6.000000e+00 : f32
    %66 = vector.broadcast %cst_32 : f32 to vector<8x8xf32>
    %67 = arith.addf %35, %66 : vector<8x8xf32>
    %68 = arith.mulf %65, %67 : vector<8x8xf32>
    %cst_33 = arith.constant 7.000000e+00 : f32
    %69 = vector.broadcast %cst_33 : f32 to vector<8x8xf32>
    %70 = arith.addf %35, %69 : vector<8x8xf32>
    %71 = tpu.reciprocal %70 {approx = true} : vector<8x8xf32> -> vector<8x8xf32>
    %72 = arith.mulf %71, %71 : vector<8x8xf32>
    %cst_34 = arith.constant 7.93650805E-4 : f32
    %73 = vector.broadcast %cst_34 : f32 to vector<8x8xf32>
    %74 = arith.mulf %72, %73 : vector<8x8xf32>
    %cst_35 = arith.constant 0.00277777785 : f32
    %75 = vector.broadcast %cst_35 : f32 to vector<8x8xf32>
    %76 = arith.subf %75, %74 : vector<8x8xf32>
    %77 = arith.mulf %72, %76 : vector<8x8xf32>
    %cst_36 = arith.constant 0.0833333358 : f32
    %78 = vector.broadcast %cst_36 : f32 to vector<8x8xf32>
    %79 = arith.subf %78, %77 : vector<8x8xf32>
    %80 = arith.mulf %71, %79 : vector<8x8xf32>
    %cst_37 = arith.constant 5.000000e-01 : f32
    %81 = vector.broadcast %cst_37 : f32 to vector<8x8xf32>
    %82 = arith.subf %70, %81 : vector<8x8xf32>
    %83 = math.log %70 : vector<8x8xf32>
    %84 = arith.mulf %82, %83 : vector<8x8xf32>
    %85 = arith.subf %84, %70 : vector<8x8xf32>
    %cst_38 = arith.constant 0.918938517 : f32
    %86 = vector.broadcast %cst_38 : f32 to vector<8x8xf32>
    %87 = arith.addf %85, %86 : vector<8x8xf32>
    %88 = arith.addf %87, %80 : vector<8x8xf32>
    %89 = math.log %68 : vector<8x8xf32>
    %90 = arith.subf %88, %89 : vector<8x8xf32>
    %cst_39 = arith.constant 1.000000e+00 : f32
    %91 = vector.broadcast %cst_39 : f32 to vector<8x4xf32>
    %92 = arith.addf %50, %91 : vector<8x4xf32>
    %93 = arith.mulf %50, %92 : vector<8x4xf32>
    %cst_40 = arith.constant 2.000000e+00 : f32
    %94 = vector.broadcast %cst_40 : f32 to vector<8x4xf32>
    %95 = arith.addf %50, %94 : vector<8x4xf32>
    %96 = arith.mulf %93, %95 : vector<8x4xf32>
    %cst_41 = arith.constant 3.000000e+00 : f32
    %97 = vector.broadcast %cst_41 : f32 to vector<8x4xf32>
    %98 = arith.addf %50, %97 : vector<8x4xf32>
    %99 = arith.mulf %96, %98 : vector<8x4xf32>
    %cst_42 = arith.constant 4.000000e+00 : f32
    %100 = vector.broadcast %cst_42 : f32 to vector<8x4xf32>
    %101 = arith.addf %50, %100 : vector<8x4xf32>
    %102 = arith.mulf %99, %101 : vector<8x4xf32>
    %cst_43 = arith.constant 5.000000e+00 : f32
    %103 = vector.broadcast %cst_43 : f32 to vector<8x4xf32>
    %104 = arith.addf %50, %103 : vector<8x4xf32>
    %105 = arith.mulf %102, %104 : vector<8x4xf32>
    %cst_44 = arith.constant 6.000000e+00 : f32
    %106 = vector.broadcast %cst_44 : f32 to vector<8x4xf32>
    %107 = arith.addf %50, %106 : vector<8x4xf32>
    %108 = arith.mulf %105, %107 : vector<8x4xf32>
    %cst_45 = arith.constant 7.000000e+00 : f32
    %109 = vector.broadcast %cst_45 : f32 to vector<8x4xf32>
    %110 = arith.addf %50, %109 : vector<8x4xf32>
    %111 = tpu.reciprocal %110 {approx = true} : vector<8x4xf32> -> vector<8x4xf32>
    %112 = arith.mulf %111, %111 : vector<8x4xf32>
    %cst_46 = arith.constant 7.93650805E-4 : f32
    %113 = vector.broadcast %cst_46 : f32 to vector<8x4xf32>
    %114 = arith.mulf %112, %113 : vector<8x4xf32>
    %cst_47 = arith.constant 0.00277777785 : f32
    %115 = vector.broadcast %cst_47 : f32 to vector<8x4xf32>
    %116 = arith.subf %115, %114 : vector<8x4xf32>
    %117 = arith.mulf %112, %116 : vector<8x4xf32>
    %cst_48 = arith.constant 0.0833333358 : f32
    %118 = vector.broadcast %cst_48 : f32 to vector<8x4xf32>
    %119 = arith.subf %118, %117 : vector<8x4xf32>
    %120 = arith.mulf %111, %119 : vector<8x4xf32>
    %cst_49 = arith.constant 5.000000e-01 : f32
    %121 = vector.broadcast %cst_49 : f32 to vector<8x4xf32>
    %122 = arith.subf %110, %121 : vector<8x4xf32>
    %123 = math.log %110 : vector<8x4xf32>
    %124 = arith.mulf %122, %123 : vector<8x4xf32>
    %125 = arith.subf %124, %110 : vector<8x4xf32>
    %cst_50 = arith.constant 0.918938517 : f32
    %126 = vector.broadcast %cst_50 : f32 to vector<8x4xf32>
    %127 = arith.addf %125, %126 : vector<8x4xf32>
    %128 = arith.addf %127, %120 : vector<8x4xf32>
    %129 = math.log %108 : vector<8x4xf32>
    %130 = arith.subf %128, %129 : vector<8x4xf32>
    %cst_51 = arith.constant dense<0.000000e+00> : vector<8xf32>
    %131 = vector.multi_reduction <add>, %90, %cst_51 [1] : vector<8x8xf32> to vector<8xf32>
    %132 = vector.shape_cast %131 : vector<8xf32> to vector<8x1xf32>
    %cst_52 = arith.constant dense<0.000000e+00> : vector<8xf32>
    %133 = vector.multi_reduction <add>, %130, %cst_52 [1] : vector<8x4xf32> to vector<8xf32>
    %134 = vector.shape_cast %133 : vector<8xf32> to vector<8x1xf32>
    %135 = arith.subf %132, %134 : vector<8x1xf32>
    %cst_53 = arith.constant 1.000000e+00 : f32
    %136 = vector.broadcast %cst_53 : f32 to vector<8x8xf32>
    %137 = arith.subf %35, %136 : vector<8x8xf32>
    %138 = arith.mulf %137, %47 : vector<8x8xf32>
    %cst_54 = arith.constant dense<0.000000e+00> : vector<8xf32>
    %139 = vector.multi_reduction <add>, %138, %cst_54 [1] : vector<8x8xf32> to vector<8xf32>
    %140 = vector.shape_cast %139 : vector<8xf32> to vector<8x1xf32>
    %141 = arith.subf %140, %135 : vector<8x1xf32>
    %cst_55 = arith.constant 2.000000e+00 : f32
    %142 = vector.broadcast %cst_55 : f32 to vector<8x8xf32>
    %143 = arith.mulf %142, %35 : vector<8x8xf32>
    %cst_56 = arith.constant 1.000000e+00 : f32
    %144 = vector.broadcast %cst_56 : f32 to vector<8x8xf32>
    %145 = arith.addf %143, %144 : vector<8x8xf32>
    %cst_57 = arith.constant 1.000000e+00 : f32
    %146 = vector.broadcast %cst_57 : f32 to vector<8x8xf32>
    %147 = arith.addf %35, %146 : vector<8x8xf32>
    %148 = arith.mulf %35, %147 : vector<8x8xf32>
    %149 = arith.divf %145, %148 : vector<8x8xf32>
    %cst_58 = arith.constant 2.000000e+00 : f32
    %150 = vector.broadcast %cst_58 : f32 to vector<8x8xf32>
    %151 = arith.mulf %150, %35 : vector<8x8xf32>
    %cst_59 = arith.constant 5.000000e+00 : f32
    %152 = vector.broadcast %cst_59 : f32 to vector<8x8xf32>
    %153 = arith.addf %151, %152 : vector<8x8xf32>
    %cst_60 = arith.constant 2.000000e+00 : f32
    %154 = vector.broadcast %cst_60 : f32 to vector<8x8xf32>
    %155 = arith.addf %35, %154 : vector<8x8xf32>
    %cst_61 = arith.constant 3.000000e+00 : f32
    %156 = vector.broadcast %cst_61 : f32 to vector<8x8xf32>
    %157 = arith.addf %35, %156 : vector<8x8xf32>
    %158 = arith.mulf %155, %157 : vector<8x8xf32>
    %159 = arith.divf %153, %158 : vector<8x8xf32>
    %160 = arith.addf %149, %159 : vector<8x8xf32>
    %cst_62 = arith.constant 2.000000e+00 : f32
    %161 = vector.broadcast %cst_62 : f32 to vector<8x8xf32>
    %162 = arith.mulf %161, %35 : vector<8x8xf32>
    %cst_63 = arith.constant 9.000000e+00 : f32
    %163 = vector.broadcast %cst_63 : f32 to vector<8x8xf32>
    %164 = arith.addf %162, %163 : vector<8x8xf32>
    %cst_64 = arith.constant 4.000000e+00 : f32
    %165 = vector.broadcast %cst_64 : f32 to vector<8x8xf32>
    %166 = arith.addf %35, %165 : vector<8x8xf32>
    %cst_65 = arith.constant 5.000000e+00 : f32
    %167 = vector.broadcast %cst_65 : f32 to vector<8x8xf32>
    %168 = arith.addf %35, %167 : vector<8x8xf32>
    %169 = arith.mulf %166, %168 : vector<8x8xf32>
    %170 = arith.divf %164, %169 : vector<8x8xf32>
    %171 = arith.addf %160, %170 : vector<8x8xf32>
    %cst_66 = arith.constant 6.000000e+00 : f32
    %172 = vector.broadcast %cst_66 : f32 to vector<8x8xf32>
    %173 = arith.addf %35, %172 : vector<8x8xf32>
    %174 = tpu.reciprocal %173 {approx = true} : vector<8x8xf32> -> vector<8x8xf32>
    %175 = arith.mulf %174, %174 : vector<8x8xf32>
    %176 = math.log %173 : vector<8x8xf32>
    %cst_67 = arith.constant 5.000000e-01 : f32
    %177 = vector.broadcast %cst_67 : f32 to vector<8x8xf32>
    %178 = arith.mulf %177, %174 : vector<8x8xf32>
    %179 = arith.subf %176, %178 : vector<8x8xf32>
    %cst_68 = arith.constant 0.0039682542 : f32
    %180 = vector.broadcast %cst_68 : f32 to vector<8x8xf32>
    %181 = arith.mulf %175, %180 : vector<8x8xf32>
    %cst_69 = arith.constant 0.00833333377 : f32
    %182 = vector.broadcast %cst_69 : f32 to vector<8x8xf32>
    %183 = arith.subf %182, %181 : vector<8x8xf32>
    %184 = arith.mulf %175, %183 : vector<8x8xf32>
    %cst_70 = arith.constant 0.0833333358 : f32
    %185 = vector.broadcast %cst_70 : f32 to vector<8x8xf32>
    %186 = arith.subf %185, %184 : vector<8x8xf32>
    %187 = arith.mulf %175, %186 : vector<8x8xf32>
    %188 = arith.subf %179, %187 : vector<8x8xf32>
    %189 = arith.subf %188, %171 : vector<8x8xf32>
    %cst_71 = arith.constant 2.000000e+00 : f32
    %190 = vector.broadcast %cst_71 : f32 to vector<8x4xf32>
    %191 = arith.mulf %190, %50 : vector<8x4xf32>
    %cst_72 = arith.constant 1.000000e+00 : f32
    %192 = vector.broadcast %cst_72 : f32 to vector<8x4xf32>
    %193 = arith.addf %191, %192 : vector<8x4xf32>
    %cst_73 = arith.constant 1.000000e+00 : f32
    %194 = vector.broadcast %cst_73 : f32 to vector<8x4xf32>
    %195 = arith.addf %50, %194 : vector<8x4xf32>
    %196 = arith.mulf %50, %195 : vector<8x4xf32>
    %197 = arith.divf %193, %196 : vector<8x4xf32>
    %cst_74 = arith.constant 2.000000e+00 : f32
    %198 = vector.broadcast %cst_74 : f32 to vector<8x4xf32>
    %199 = arith.mulf %198, %50 : vector<8x4xf32>
    %cst_75 = arith.constant 5.000000e+00 : f32
    %200 = vector.broadcast %cst_75 : f32 to vector<8x4xf32>
    %201 = arith.addf %199, %200 : vector<8x4xf32>
    %cst_76 = arith.constant 2.000000e+00 : f32
    %202 = vector.broadcast %cst_76 : f32 to vector<8x4xf32>
    %203 = arith.addf %50, %202 : vector<8x4xf32>
    %cst_77 = arith.constant 3.000000e+00 : f32
    %204 = vector.broadcast %cst_77 : f32 to vector<8x4xf32>
    %205 = arith.addf %50, %204 : vector<8x4xf32>
    %206 = arith.mulf %203, %205 : vector<8x4xf32>
    %207 = arith.divf %201, %206 : vector<8x4xf32>
    %208 = arith.addf %197, %207 : vector<8x4xf32>
    %cst_78 = arith.constant 2.000000e+00 : f32
    %209 = vector.broadcast %cst_78 : f32 to vector<8x4xf32>
    %210 = arith.mulf %209, %50 : vector<8x4xf32>
    %cst_79 = arith.constant 9.000000e+00 : f32
    %211 = vector.broadcast %cst_79 : f32 to vector<8x4xf32>
    %212 = arith.addf %210, %211 : vector<8x4xf32>
    %cst_80 = arith.constant 4.000000e+00 : f32
    %213 = vector.broadcast %cst_80 : f32 to vector<8x4xf32>
    %214 = arith.addf %50, %213 : vector<8x4xf32>
    %cst_81 = arith.constant 5.000000e+00 : f32
    %215 = vector.broadcast %cst_81 : f32 to vector<8x4xf32>
    %216 = arith.addf %50, %215 : vector<8x4xf32>
    %217 = arith.mulf %214, %216 : vector<8x4xf32>
    %218 = arith.divf %212, %217 : vector<8x4xf32>
    %219 = arith.addf %208, %218 : vector<8x4xf32>
    %cst_82 = arith.constant 6.000000e+00 : f32
    %220 = vector.broadcast %cst_82 : f32 to vector<8x4xf32>
    %221 = arith.addf %50, %220 : vector<8x4xf32>
    %222 = tpu.reciprocal %221 {approx = true} : vector<8x4xf32> -> vector<8x4xf32>
    %223 = arith.mulf %222, %222 : vector<8x4xf32>
    %224 = math.log %221 : vector<8x4xf32>
    %cst_83 = arith.constant 5.000000e-01 : f32
    %225 = vector.broadcast %cst_83 : f32 to vector<8x4xf32>
    %226 = arith.mulf %225, %222 : vector<8x4xf32>
    %227 = arith.subf %224, %226 : vector<8x4xf32>
    %cst_84 = arith.constant 0.0039682542 : f32
    %228 = vector.broadcast %cst_84 : f32 to vector<8x4xf32>
    %229 = arith.mulf %223, %228 : vector<8x4xf32>
    %cst_85 = arith.constant 0.00833333377 : f32
    %230 = vector.broadcast %cst_85 : f32 to vector<8x4xf32>
    %231 = arith.subf %230, %229 : vector<8x4xf32>
    %232 = arith.mulf %223, %231 : vector<8x4xf32>
    %cst_86 = arith.constant 0.0833333358 : f32
    %233 = vector.broadcast %cst_86 : f32 to vector<8x4xf32>
    %234 = arith.subf %233, %232 : vector<8x4xf32>
    %235 = arith.mulf %223, %234 : vector<8x4xf32>
    %236 = arith.subf %227, %235 : vector<8x4xf32>
    %237 = arith.subf %236, %219 : vector<8x4xf32>
    %cst_87 = arith.constant 1.000000e+00 : f32
    %238 = vector.broadcast %cst_87 : f32 to vector<8x8xf32>
    %239 = arith.subf %35, %238 : vector<8x8xf32>
    %240 = arith.mulf %239, %189 : vector<8x8xf32>
    %cst_88 = arith.constant dense<0.000000e+00> : vector<8xf32>
    %241 = vector.multi_reduction <add>, %240, %cst_88 [1] : vector<8x8xf32> to vector<8xf32>
    %242 = vector.shape_cast %241 : vector<8xf32> to vector<8x1xf32>
    %243 = arith.subf %135, %242 : vector<8x1xf32>
    %cst_89 = arith.constant 2.000000e+00 : f32
    %244 = vector.broadcast %cst_89 : f32 to vector<8x4xf32>
    %245 = arith.subf %50, %244 : vector<8x4xf32>
    %246 = arith.mulf %245, %237 : vector<8x4xf32>
    %cst_90 = arith.constant dense<0.000000e+00> : vector<8xf32>
    %247 = vector.multi_reduction <add>, %246, %cst_90 [1] : vector<8x4xf32> to vector<8xf32>
    %248 = vector.shape_cast %247 : vector<8xf32> to vector<8x1xf32>
    %249 = arith.addf %243, %248 : vector<8x1xf32>
    %250 = tpu.iota {dimensions = array<i32: 1>} : vector<8x128xi32>
    %c0_i32 = arith.constant 0 : i32
    %251 = vector.broadcast %c0_i32 : i32 to vector<8x128xi32>
    %252 = arith.cmpi eq, %250, %251 : vector<8x128xi32>
    %c1_i32 = arith.constant 1 : i32
    %253 = vector.broadcast %c1_i32 : i32 to vector<8x128xi32>
    %254 = arith.cmpi eq, %250, %253 : vector<8x128xi32>
    %c2_i32 = arith.constant 2 : i32
    %255 = vector.broadcast %c2_i32 : i32 to vector<8x128xi32>
    %256 = arith.cmpi eq, %250, %255 : vector<8x128xi32>
    %cst_91 = arith.constant 0.000000e+00 : f32
    %257 = vector.shape_cast %249 : vector<8x1xf32> to vector<8x1xf32>
    %258 = vector.broadcast %257 : vector<8x1xf32> to vector<8x128xf32>
    %259 = vector.broadcast %cst_91 : f32 to vector<8x128xf32>
    %260 = arith.select %256, %258, %259 : vector<8x128xi1>, vector<8x128xf32>
    %261 = vector.shape_cast %36 : vector<8x1xf32> to vector<8x1xf32>
    %262 = vector.broadcast %261 : vector<8x1xf32> to vector<8x128xf32>
    %263 = arith.select %254, %262, %260 : vector<8x128xi1>, vector<8x128xf32>
    %264 = vector.shape_cast %141 : vector<8x1xf32> to vector<8x1xf32>
    %265 = vector.broadcast %264 : vector<8x1xf32> to vector<8x128xf32>
    %266 = arith.select %252, %265, %263 : vector<8x128xi1>, vector<8x128xf32>
    %c0_92 = arith.constant 0 : index
    %c0_93 = arith.constant 0 : index
    %267 = vector.load %arg9[%c0_92, %c0_93] : memref<8x128xf32, #tpu.memory_space<vmem>>, vector<8x128xf32>
    tpu.vector_store %arg9[%c0_92, %c0_93], %266 {strides = array<i32>} : memref<8x128xf32, #tpu.memory_space<vmem>>, vector<8x128xf32>,
    return
  }
  func.func @transform_0(%arg0: i32) -> (i32, i32) {
    %c0_i32 = arith.constant 0 : i32
    %c0_i32_0 = arith.constant 0 : i32
    return %arg0, %c0_i32 : i32, i32
  }
  func.func @transform_1(%arg0: i32) -> (i32, i32) {
    %c0_i32 = arith.constant 0 : i32
    %c0_i32_0 = arith.constant 0 : i32
    return %arg0, %c0_i32 : i32, i32
  }
  func.func @transform_2(%arg0: i32) -> (i32, i32) {
    %c0_i32 = arith.constant 0 : i32
    %c0_i32_0 = arith.constant 0 : i32
    %c0_i32_1 = arith.constant 0 : i32
    return %c0_i32, %c0_i32_0 : i32, i32
  }
  func.func @transform_3(%arg0: i32) -> (i32, i32) {
    %c0_i32 = arith.constant 0 : i32
    %c0_i32_0 = arith.constant 0 : i32
    %c0_i32_1 = arith.constant 0 : i32
    return %c0_i32, %c0_i32_0 : i32, i32
  }
  func.func @transform_4(%arg0: i32) -> (i32, i32) {
    %c0_i32 = arith.constant 0 : i32
    %c0_i32_0 = arith.constant 0 : i32
    %c0_i32_1 = arith.constant 0 : i32
    return %c0_i32, %c0_i32_0 : i32, i32
  }
  func.func @transform_5(%arg0: i32) -> (i32, i32) {
    %c0_i32 = arith.constant 0 : i32
    %c0_i32_0 = arith.constant 0 : i32
    %c0_i32_1 = arith.constant 0 : i32
    return %c0_i32, %c0_i32_0 : i32, i32
  }
  func.func @transform_6(%arg0: i32) -> (i32, i32) {
    %c0_i32 = arith.constant 0 : i32
    %c0_i32_0 = arith.constant 0 : i32
    %c0_i32_1 = arith.constant 0 : i32
    return %c0_i32, %c0_i32_0 : i32, i32
  }
  func.func @transform_7(%arg0: i32) -> (i32, i32) {
    %c0_i32 = arith.constant 0 : i32
    %c0_i32_0 = arith.constant 0 : i32
    %c0_i32_1 = arith.constant 0 : i32
    return %c0_i32, %c0_i32_0 : i32, i32
  }
  func.func @transform_8(%arg0: i32) -> (i32, i32) {
    %c0_i32 = arith.constant 0 : i32
    %c0_i32_0 = arith.constant 0 : i32
    return %arg0, %c0_i32 : i32, i32
  }
}

</mosaic_0001>

<llo_original>
// kernel: tpu_custom_call.1
$region0: #{tpu_custom_call.1}
  #allocation0 [shape = 'u32[]', space=smem, size = 0x4, offset = 0x4, fixed_abs, tag = 'smem constant byte address 0x4 - core index']
  #allocation1 [shape = 'u32[72,128]{1,0:T(1,128)}', space=vmem, size = 0x9000, scoped, tag = 'internal scratch']
  %s0 = inlined_call_operand.vmem [shape: f32[8,32], index: 0, kind: input, shape index: {}]
  %s1 = inlined_call_operand.vmem [shape: f32[8,4], index: 1, kind: input, shape index: {}]
  %s2 = inlined_call_operand.hbm [shape: bf16[32,128], index: 2, kind: input, shape index: {}]
  %s3 = inlined_call_operand.vmem [shape: f32[1,128], index: 3, kind: input, shape index: {}]
  %s4 = inlined_call_operand.vmem [shape: bf16[128,128], index: 4, kind: input, shape index: {}]
  %s5 = inlined_call_operand.vmem [shape: f32[1,128], index: 5, kind: input, shape index: {}]
  %s6 = inlined_call_operand.vmem [shape: bf16[128,9], index: 6, kind: input, shape index: {}]
  %s7 = inlined_call_operand.vmem [shape: f32[1,9], index: 7, kind: input, shape index: {}]
  %s8 = inlined_call_operand.hbm [shape: f32[8,128], index: 8, kind: output, shape index: {}]
  %s9 = sld [smem:[#allocation0]]
  $region46: #{tpu_custom_call.1} parent=0
    _
  %s11 = ssub.s32 1, %s9
  %s12 = scalar_select 0, %s11, %s9
  $region1: #{tpu_custom_call.1} parent=0
    #allocation2 [shape = 'u8[8192]{0}', space=vmem, size = 0x2000, scoped, tag = 'input window, operand 2, single buffered']
    #allocation3 [shape = 's32[1]{0}', space=sflag, size = 0x4, scoped, tag = 'scoped memory for tpu_custom_call.1']
    #allocation4 [shape = 's32[1]{0}', space=sflag, size = 0x4, scoped, tag = 'scoped memory for tpu_custom_call.1']
    #allocation5 [shape = 'u8[4096]{0}', space=vmem, size = 0x1000, scoped, tag = 'output window, operand 0, single buffered']
    %13 = vsyncpa [#allocation3], 0
    %14 = vsyncpa [#allocation4], 0
    // Predicated region
    $region2: #{tpu_custom_call.1} parent=1 // pred_check
      _
    $region3: #{tpu_custom_call.1} parent=1 // pred_check_branch
      %16 = sbr.rel (0) target = $region5
    $region4: #{tpu_custom_call.1} parent=1 // pred_region
      _
    $region5: #{tpu_custom_call.1} parent=1 // pred_fallthru
      _
    // Predicated region
    $region6: #{tpu_custom_call.1} parent=1 // pred_check
      _
    $region7: #{tpu_custom_call.1} parent=1 // pred_check_branch
      %18 = sbr.rel (0) target = $region9
    $region8: #{tpu_custom_call.1} parent=1 // pred_region
      _
    $region9: #{tpu_custom_call.1} parent=1 // pred_fallthru
      _
    // Predicated region
    $region10: #{tpu_custom_call.1} parent=1 // pred_check
      _
    $region11: #{tpu_custom_call.1} parent=1 // pred_check_branch
      %20 = sbr.rel (0) target = $region13
    $region12: #{tpu_custom_call.1} parent=1 // pred_region
      %22 = vsyncadd [#allocation3], 0
      %s23 = sshll.u32 %s2, 4
      %s24 = int_to_ptr.hbm [resolvable:$true] %s23
      %s25 = sshll.u32 [#allocation2], 4
      %s26 = int_to_ptr.vmem [resolvable:$true] %s25
      %31 = dma.hbm_to_vmem [thread:$0]  %s24, 256, %s26, [#allocation3], 64, 64, 4
    $region13: #{tpu_custom_call.1} parent=1 // pred_fallthru
      _
    // Predicated region
    $region14: #{tpu_custom_call.1} parent=1 // pred_check
      _
    $region15: #{tpu_custom_call.1} parent=1 // pred_check_branch
      %33 = sbr.rel (0) target = $region17
    $region16: #{tpu_custom_call.1} parent=1 // pred_region
      _
    $region17: #{tpu_custom_call.1} parent=1 // pred_fallthru
      _
    // Predicated region
    $region18: #{tpu_custom_call.1} parent=1 // pred_check
      _
    $region19: #{tpu_custom_call.1} parent=1 // pred_check_branch
      %35 = sbr.rel (0) target = $region21
    $region20: #{tpu_custom_call.1} parent=1 // pred_region
      _
    $region21: #{tpu_custom_call.1} parent=1 // pred_fallthru
      _
    // Predicated region
    $region22: #{tpu_custom_call.1} parent=1 // pred_check
      _
    $region23: #{tpu_custom_call.1} parent=1 // pred_check_branch
      %37 = sbr.rel (0) target = $region25
    $region24: #{tpu_custom_call.1} parent=1 // pred_region
      _
    $region25: #{tpu_custom_call.1} parent=1 // pred_fallthru
      _
    // Predicated region
    $region26: #{tpu_custom_call.1} parent=1 // pred_check
      _
    $region27: #{tpu_custom_call.1} parent=1 // pred_check_branch
      %39 = sbr.rel (0) target = $region29
    $region28: #{tpu_custom_call.1} parent=1 // pred_region
      _
    $region29: #{tpu_custom_call.1} parent=1 // pred_fallthru
      _
    // Predicated region
    $region30: #{tpu_custom_call.1} parent=1 // pred_check
      _
    $region31: #{tpu_custom_call.1} parent=1 // pred_check_branch
      %41 = sbr.rel (0) target = $region33
    $region32: #{tpu_custom_call.1} parent=1 // pred_region
      _
    $region33: #{tpu_custom_call.1} parent=1 // pred_fallthru
      _
    // Predicated region
    $region34: #{tpu_custom_call.1} parent=1 // pred_check
      _
    $region35: #{tpu_custom_call.1} parent=1 // pred_check_branch
      %43 = sbr.rel (0) target = $region37
    $region36: #{tpu_custom_call.1} parent=1 // pred_region
      %45 = dma.done [#allocation3], 256
    $region37: #{tpu_custom_call.1} parent=1 // pred_fallthru
      _
    %v47 = vld [vmem:[%s0] sm:$0xff]
    %v48 = vpack.c.bf16 %v47, %v47
    %v49 = vld [vmem:[#allocation2] sm:$0xf]
    %v50 = vld [vmem:[#allocation2 + $0x4] sm:$0xf]
    %v51 = vld [vmem:[#allocation2 + $0x8] sm:$0xf]
    %v52 = vld [vmem:[#allocation2 + $0xc] sm:$0xf]
    %v53 = vld [vmem:[%s3] sm:$0x1]
    %v55 = vperm.slane %v53, 0
    %v61 = vunpack.c.l.b16 %v49
    %v62 = vunpack.c.l.b16 %v50
    %v63 = vunpack.c.l.b16 %v51
    %v64 = vunpack.c.l.b16 %v52
    %v65 = vpack.c.b16 %v62, %v61
    %v66 = vpack.c.b16 %v64, %v63
    %vm69 = vcmask 261120
    %v71 = vsel %vm69, %v48, 0
    %73 = vmatpush.bf16.msra.mxu0 0
    %74 = vmatpush.bf16.msra.mxu0 0
    %75 = vmatpush.bf16.msra.mxu0 0
    %76 = vmatpush.bf16.msra.mxu0 0
    %77 = vmatpush.bf16.msra.mxu0 0
    %78 = vmatpush.bf16.msra.mxu0 0
    %79 = vmatpush.bf16.msra.mxu0 %v66
    %80 = vmatpush.bf16.msra.mxu0 %v65
    %81 = vmatmul.bf16.gmra.mxu0 %v71
    %v82 = vpop.f32.mrf.mxu0
    %v83 = vadd.f32 %v55, %v82
    %v84 = vpop.f32.mrf.mxu0
    %85 = vdwg.mxu0
    %v86 = vmax.f32 %v83, 0.0
    %v87 = vpack.c.bf16 %v86, %v86
    %v88 = vld [vmem:[%s4] sm:$0xf]
    %v89 = vld [vmem:[%s4 + $0x4] sm:$0xf]
    %v90 = vld [vmem:[%s4 + $0x8] sm:$0xf]
    %v91 = vld [vmem:[%s4 + $0xc] sm:$0xf]
    %v92 = vld [vmem:[%s4 + $0x10] sm:$0xf]
    %v93 = vld [vmem:[%s4 + $0x14] sm:$0xf]
    %v94 = vld [vmem:[%s4 + $0x18] sm:$0xf]
    %v95 = vld [vmem:[%s4 + $0x1c] sm:$0xf]
    %v96 = vld [vmem:[%s4 + $0x20] sm:$0xf]
    %v97 = vld [vmem:[%s4 + $0x24] sm:$0xf]
    %v98 = vld [vmem:[%s4 + $0x28] sm:$0xf]
    %v99 = vld [vmem:[%s4 + $0x2c] sm:$0xf]
    %v100 = vld [vmem:[%s4 + $0x30] sm:$0xf]
    %v101 = vld [vmem:[%s4 + $0x34] sm:$0xf]
    %v102 = vld [vmem:[%s4 + $0x38] sm:$0xf]
    %v103 = vld [vmem:[%s4 + $0x3c] sm:$0xf]
    %v104 = vld [vmem:[%s5] sm:$0x1]
    %v106 = vperm.slane %v104, 0
    %v124 = vunpack.c.l.b16 %v88
    %v125 = vunpack.c.l.b16 %v89
    %v126 = vunpack.c.l.b16 %v90
    %v127 = vunpack.c.l.b16 %v91
    %v128 = vunpack.c.l.b16 %v92
    %v129 = vunpack.c.l.b16 %v93
    %v130 = vunpack.c.l.b16 %v94
    %v131 = vunpack.c.l.b16 %v95
    %v132 = vunpack.c.l.b16 %v96
    %v133 = vunpack.c.l.b16 %v97
    %v134 = vunpack.c.l.b16 %v98
    %v135 = vunpack.c.l.b16 %v99
    %v136 = vunpack.c.l.b16 %v100
    %v137 = vunpack.c.l.b16 %v101
    %v138 = vunpack.c.l.b16 %v102
    %v139 = vunpack.c.l.b16 %v103
    %v140 = vpack.c.b16 %v125, %v124
    %v141 = vpack.c.b16 %v127, %v126
    %v142 = vpack.c.b16 %v129, %v128
    %v143 = vpack.c.b16 %v131, %v130
    %v144 = vpack.c.b16 %v133, %v132
    %v145 = vpack.c.b16 %v135, %v134
    %v146 = vpack.c.b16 %v137, %v136
    %v147 = vpack.c.b16 %v139, %v138
    %156 = vmatpush.bf16.msra.mxu0 %v147
    %157 = vmatpush.bf16.msra.mxu0 %v146
    %158 = vmatpush.bf16.msra.mxu0 %v145
    %159 = vmatpush.bf16.msra.mxu0 %v144
    %160 = vmatpush.bf16.msra.mxu0 %v143
    %161 = vmatpush.bf16.msra.mxu0 %v142
    %162 = vmatpush.bf16.msra.mxu0 %v141
    %163 = vmatpush.bf16.msra.mxu0 %v140
    %164 = vmatmul.bf16.gmra.mxu0 %v87
    %v165 = vpop.f32.mrf.mxu0
    %v166 = vadd.f32 %v106, %v165
    %v167 = vpop.f32.mrf.mxu0
    %168 = vdwg.mxu0
    %v169 = vmax.f32 %v166, 0.0
    %v170 = vpack.c.bf16 %v169, %v169
    %v171 = vld [vmem:[%s6] sm:$0xf]
    %v172 = vld [vmem:[%s6 + $0x4] sm:$0xf]
    %v173 = vld [vmem:[%s6 + $0x8] sm:$0xf]
    %v174 = vld [vmem:[%s6 + $0xc] sm:$0xf]
    %v175 = vld [vmem:[%s6 + $0x10] sm:$0xf]
    %v176 = vld [vmem:[%s6 + $0x14] sm:$0xf]
    %v177 = vld [vmem:[%s6 + $0x18] sm:$0xf]
    %v178 = vld [vmem:[%s6 + $0x1c] sm:$0xf]
    %v179 = vld [vmem:[%s6 + $0x20] sm:$0xf]
    %v180 = vld [vmem:[%s6 + $0x24] sm:$0xf]
    %v181 = vld [vmem:[%s6 + $0x28] sm:$0xf]
    %v182 = vld [vmem:[%s6 + $0x2c] sm:$0xf]
    %v183 = vld [vmem:[%s6 + $0x30] sm:$0xf]
    %v184 = vld [vmem:[%s6 + $0x34] sm:$0xf]
    %v185 = vld [vmem:[%s6 + $0x38] sm:$0xf]
    %v186 = vld [vmem:[%s6 + $0x3c] sm:$0xf]
    %v187 = vld [vmem:[%s7] sm:$0x1]
    %v189 = vperm.slane %v187, 0
    %v207 = vunpack.c.l.b16 %v171
    %v208 = vunpack.c.l.b16 %v172
    %v209 = vunpack.c.l.b16 %v173
    %v210 = vunpack.c.l.b16 %v174
    %v211 = vunpack.c.l.b16 %v175
    %v212 = vunpack.c.l.b16 %v176
    %v213 = vunpack.c.l.b16 %v177
    %v214 = vunpack.c.l.b16 %v178
    %v215 = vunpack.c.l.b16 %v179
    %v216 = vunpack.c.l.b16 %v180
    %v217 = vunpack.c.l.b16 %v181
    %v218 = vunpack.c.l.b16 %v182
    %v219 = vunpack.c.l.b16 %v183
    %v220 = vunpack.c.l.b16 %v184
    %v221 = vunpack.c.l.b16 %v185
    %v222 = vunpack.c.l.b16 %v186
    %v223 = vpack.c.b16 %v208, %v207
    %v224 = vpack.c.b16 %v210, %v209
    %v225 = vpack.c.b16 %v212, %v211
    %v226 = vpack.c.b16 %v214, %v213
    %v227 = vpack.c.b16 %v216, %v215
    %v228 = vpack.c.b16 %v218, %v217
    %v229 = vpack.c.b16 %v220, %v219
    %v230 = vpack.c.b16 %v222, %v221
    %239 = vmatpush.bf16.msra.mxu0 %v230
    %240 = vmatpush.bf16.msra.mxu0 %v229
    %241 = vmatpush.bf16.msra.mxu0 %v228
    %242 = vmatpush.bf16.msra.mxu0 %v227
    %243 = vmatpush.bf16.msra.mxu0 %v226
    %244 = vmatpush.bf16.msra.mxu0 %v225
    %245 = vmatpush.bf16.msra.mxu0 %v224
    %246 = vmatpush.bf16.msra.mxu0 %v223
    %247 = vmatmul.bf16.gmra.mxu0 %v170
    %v248 = vpop.f32.mrf.mxu0
    %v249 = vadd.f32 %v189, %v248
    %v250 = vpop.f32.mrf.mxu0
    %251 = vdwg.mxu0
    %v252 = vmax.f32 %v249, 0.0
    %v253 = vand.u32 2147483647, %v249
    %v254 = vsub.f32 0.0, %v253
    %v255 = vmul.f32 %v254, 1.442695
    %v256 = vpow.pop %v255
    %v257 = vadd.f32 %v256, 1.0
    %v258 = vlog2.pop %v257
    %v259 = vmul.f32 %v258, 0.6931472
    %v260 = vadd.f32 %v252, %v259
    %v261 = vadd.f32 %v260, 1.0
    %v262 = vld [vmem:[%s1] sm:$0xff]
    %v263 = vadd.f32 %v262, 1.0
    %v264 = vmul.f32 %v263, 0.5
    %v265 = vsub.f32 1.0, %v262
    %v266 = vmul.f32 %v265, 0.5
    %268 = vrot.lane.b32.xlu0 %v266, 4
    %v269 = vpop.permute.xlu0 %268
    %vm271 = vcmask 31744
    %v272 = vsel %vm271, %v264, %v269
    %v273 = vlog2.pop %v272
    %v274 = vmul.f32 %v273, 0.6931472
    %276 = vrot.lane.b32.xlu0 %v261, 124
    %v277 = vpop.permute.xlu0 %276
    %v279 = vadd.f32 %v261, %v277
    %v280 = vadd.f32 %v261, 1.0
    %v281 = vmul.f32 %v261, %v280
    %v282 = vadd.f32 %v261, 2.0
    %v283 = vmul.f32 %v281, %v282
    %v284 = vadd.f32 %v261, 3.0
    %v285 = vmul.f32 %v283, %v284
    %v286 = vadd.f32 %v261, 4.0
    %v287 = vmul.f32 %v285, %v286
    %v288 = vadd.f32 %v261, 5.0
    %v289 = vmul.f32 %v287, %v288
    %v290 = vadd.f32 %v261, 6.0
    %v291 = vmul.f32 %v289, %v290
    %v292 = vadd.f32 %v261, 7.0
    %v293 = vrcp.pop %v292
    %v294 = vmul.f32 %v293, %v293
    %v295 = vmul.f32 %v294, 0.0007936508
    %v296 = vsub.f32 0.0027777778, %v295
    %v297 = vmul.f32 %v294, %v296
    %v298 = vsub.f32 0.083333336, %v297
    %v299 = vmul.f32 %v293, %v298
    %v300 = vsub.f32 %v292, 0.5
    %v301 = vlog2.pop %v292
    %v302 = vmul.f32 %v301, 0.6931472
    %v303 = vmul.f32 %v300, %v302
    %v304 = vsub.f32 %v303, %v292
    %v305 = vadd.f32 %v304, 0.9189385
    %v306 = vadd.f32 %v305, %v299
    %v307 = vlog2.pop %v291
    %v308 = vmul.f32 %v307, 0.6931472
    %v309 = vsub.f32 %v306, %v308
    %v310 = vadd.f32 %v279, 1.0
    %v311 = vmul.f32 %v279, %v310
    %v312 = vadd.f32 %v279, 2.0
    %v313 = vmul.f32 %v311, %v312
    %v314 = vadd.f32 %v279, 3.0
    %v315 = vmul.f32 %v313, %v314
    %v316 = vadd.f32 %v279, 4.0
    %v317 = vmul.f32 %v315, %v316
    %v318 = vadd.f32 %v279, 5.0
    %v319 = vmul.f32 %v317, %v318
    %v320 = vadd.f32 %v279, 6.0
    %v321 = vmul.f32 %v319, %v320
    %v322 = vadd.f32 %v279, 7.0
    %v323 = vrcp.pop %v322
    %v324 = vmul.f32 %v323, %v323
    %v325 = vmul.f32 %v324, 0.0007936508
    %v326 = vsub.f32 0.0027777778, %v325
    %v327 = vmul.f32 %v324, %v326
    %v328 = vsub.f32 0.083333336, %v327
    %v329 = vmul.f32 %v323, %v328
    %v330 = vsub.f32 %v322, 0.5
    %v331 = vlog2.pop %v322
    %v332 = vmul.f32 %v331, 0.6931472
    %v333 = vmul.f32 %v330, %v332
    %v334 = vsub.f32 %v333, %v322
    %v335 = vadd.f32 %v334, 0.9189385
    %v336 = vadd.f32 %v335, %v329
    %v337 = vlog2.pop %v321
    %v338 = vmul.f32 %v337, 0.6931472
    %v339 = vsub.f32 %v336, %v338
    %vm340 = vcmask 64512
    %v341 = vsel %vm340, %v309, 0.0
    %342 = vadd.xlane.f32.xlu0 %v341
    %v343 = vpop.xlane.xlu0 %342
    %v344 = vsel %vm271, %v339, 0.0
    %345 = vadd.xlane.f32.xlu0 %v344
    %v346 = vpop.xlane.xlu0 %345
    %v347 = vsub.f32 %v343, %v346
    %v348 = vsub.f32 %v261, 1.0
    %v349 = vmul.f32 %v348, %v274
    %v350 = vsel %vm340, %v349, 0.0
    %351 = vadd.xlane.f32.xlu0 %v350
    %v352 = vpop.xlane.xlu0 %351
    %v353 = vsub.f32 %v352, %v347
    %v354 = vmul.f32 %v261, 2.0
    %v355 = vadd.f32 %v354, 1.0
    %v356 = vrcp.pop %v281
    %v357 = vmul.f32 %v281, %v356
    %v358 = vsub.f32 1.0, %v357
    %v359 = vmul.f32 %v356, %v358
    %v360 = vadd.f32 %v356, %v359
    %vm361 = vweird.f32 %v281
    %vm362 = vweird.f32 %v356
    %vm363 = vmor %vm361, %vm362
    %v364 = vsel %vm363, %v356, %v360
    %v365 = vand.u32 2147483647, %v281
    %vm366 = vcmp.eq.f32.partialorder %v365, 8.507059e+37
    %v367 = vand.u32 %v281, 2147483648
    %v368 = vor.u32 1.1754944e-38, %v367
    %v369 = vsel %vm366, %v368, %v364
    %v370 = vmul.f32 %v355, %v369
    %v371 = vadd.f32 %v354, 5.0
    %v372 = vmul.f32 %v282, %v284
    %v373 = vrcp.pop %v372
    %v374 = vmul.f32 %v372, %v373
    %v375 = vsub.f32 1.0, %v374
    %v376 = vmul.f32 %v373, %v375
    %v377 = vadd.f32 %v373, %v376
    %vm378 = vweird.f32 %v372
    %vm379 = vweird.f32 %v373
    %vm380 = vmor %vm378, %vm379
    %v381 = vsel %vm380, %v373, %v377
    %v382 = vand.u32 2147483647, %v372
    %vm383 = vcmp.eq.f32.partialorder %v382, 8.507059e+37
    %v384 = vand.u32 %v372, 2147483648
    %v385 = vor.u32 1.1754944e-38, %v384
    %v386 = vsel %vm383, %v385, %v381
    %v387 = vmul.f32 %v371, %v386
    %v388 = vadd.f32 %v370, %v387
    %v389 = vadd.f32 %v354, 9.0
    %v390 = vmul.f32 %v286, %v288
    %v391 = vrcp.pop %v390
    %v392 = vmul.f32 %v390, %v391
    %v393 = vsub.f32 1.0, %v392
    %v394 = vmul.f32 %v391, %v393
    %v395 = vadd.f32 %v391, %v394
    %vm396 = vweird.f32 %v390
    %vm397 = vweird.f32 %v391
    %vm398 = vmor %vm396, %vm397
    %v399 = vsel %vm398, %v391, %v395
    %v400 = vand.u32 2147483647, %v390
    %vm401 = vcmp.eq.f32.partialorder %v400, 8.507059e+37
    %v402 = vand.u32 %v390, 2147483648
    %v403 = vor.u32 1.1754944e-38, %v402
    %v404 = vsel %vm401, %v403, %v399
    %v405 = vmul.f32 %v389, %v404
    %v406 = vadd.f32 %v388, %v405
    %v407 = vrcp.pop %v290
    %v408 = vmul.f32 %v407, %v407
    %v409 = vlog2.pop %v290
    %v410 = vmul.f32 %v409, 0.6931472
    %v411 = vmul.f32 %v407, 0.5
    %v412 = vsub.f32 %v410, %v411
    %v413 = vmul.f32 %v408, 0.003968254
    %v414 = vsub.f32 0.008333334, %v413
    %v415 = vmul.f32 %v408, %v414
    %v416 = vsub.f32 0.083333336, %v415
    %v417 = vmul.f32 %v408, %v416
    %v418 = vsub.f32 %v412, %v417
    %v419 = vsub.f32 %v418, %v406
    %v420 = vmul.f32 %v279, 2.0
    %v421 = vadd.f32 %v420, 1.0
    %v422 = vrcp.pop %v311
    %v423 = vmul.f32 %v311, %v422
    %v424 = vsub.f32 1.0, %v423
    %v425 = vmul.f32 %v422, %v424
    %v426 = vadd.f32 %v422, %v425
    %vm427 = vweird.f32 %v311
    %vm428 = vweird.f32 %v422
    %vm429 = vmor %vm427, %vm428
    %v430 = vsel %vm429, %v422, %v426
    %v431 = vand.u32 2147483647, %v311
    %vm432 = vcmp.eq.f32.partialorder %v431, 8.507059e+37
    %v433 = vand.u32 %v311, 2147483648
    %v434 = vor.u32 1.1754944e-38, %v433
    %v435 = vsel %vm432, %v434, %v430
    %v436 = vmul.f32 %v421, %v435
    %v437 = vadd.f32 %v420, 5.0
    %v438 = vmul.f32 %v312, %v314
    %v439 = vrcp.pop %v438
    %v440 = vmul.f32 %v438, %v439
    %v441 = vsub.f32 1.0, %v440
    %v442 = vmul.f32 %v439, %v441
    %v443 = vadd.f32 %v439, %v442
    %vm444 = vweird.f32 %v438
    %vm445 = vweird.f32 %v439
    %vm446 = vmor %vm444, %vm445
    %v447 = vsel %vm446, %v439, %v443
    %v448 = vand.u32 2147483647, %v438
    %vm449 = vcmp.eq.f32.partialorder %v448, 8.507059e+37
    %v450 = vand.u32 %v438, 2147483648
    %v451 = vor.u32 1.1754944e-38, %v450
    %v452 = vsel %vm449, %v451, %v447
    %v453 = vmul.f32 %v437, %v452
    %v454 = vadd.f32 %v436, %v453
    %v455 = vadd.f32 %v420, 9.0
    %v456 = vmul.f32 %v316, %v318
    %v457 = vrcp.pop %v456
    %v458 = vmul.f32 %v456, %v457
    %v459 = vsub.f32 1.0, %v458
    %v460 = vmul.f32 %v457, %v459
    %v461 = vadd.f32 %v457, %v460
    %vm462 = vweird.f32 %v456
    %vm463 = vweird.f32 %v457
    %vm464 = vmor %vm462, %vm463
    %v465 = vsel %vm464, %v457, %v461
    %v466 = vand.u32 2147483647, %v456
    %vm467 = vcmp.eq.f32.partialorder %v466, 8.507059e+37
    %v468 = vand.u32 %v456, 2147483648
    %v469 = vor.u32 1.1754944e-38, %v468
    %v470 = vsel %vm467, %v469, %v465
    %v471 = vmul.f32 %v455, %v470
    %v472 = vadd.f32 %v454, %v471
    %v473 = vrcp.pop %v320
    %v474 = vmul.f32 %v473, %v473
    %v475 = vlog2.pop %v320
    %v476 = vmul.f32 %v475, 0.6931472
    %v477 = vmul.f32 %v473, 0.5
    %v478 = vsub.f32 %v476, %v477
    %v479 = vmul.f32 %v474, 0.003968254
    %v480 = vsub.f32 0.008333334, %v479
    %v481 = vmul.f32 %v474, %v480
    %v482 = vsub.f32 0.083333336, %v481
    %v483 = vmul.f32 %v474, %v482
    %v484 = vsub.f32 %v478, %v483
    %v485 = vsub.f32 %v484, %v472
    %v486 = vmul.f32 %v348, %v419
    %v487 = vsel %vm340, %v486, 0.0
    %488 = vadd.xlane.f32.xlu0 %v487
    %v489 = vpop.xlane.xlu0 %488
    %v490 = vsub.f32 %v347, %v489
    %v491 = vsub.f32 %v279, 2.0
    %v492 = vmul.f32 %v491, %v485
    %v493 = vsel %vm271, %v492, 0.0
    %494 = vadd.xlane.f32.xlu0 %v493
    %v495 = vpop.xlane.xlu0 %494
    %v496 = vadd.f32 %v490, %v495
    %v497 = vlaneseq
    %v498 = vand.u32 %v497, 127
    %vm499 = vcmp.eq.s32.totalorder %v498, 0
    %vm500 = vcmp.eq.s32.totalorder %v498, 1
    %vm501 = vcmp.eq.s32.totalorder %v498, 2
    %v502 = vsel %vm501, %v496, 0.0
    %504 = vset.pattern.permute.xlu0 8
    %505 = vperm.xlu0 %504, %v249
    %v506 = vpop.permute.xlu0 %505
    %v508 = vsel %vm500, %v506, %v502
    %v509 = vsel %vm499, %v353, %v508
    %510 = vst [vmem:[#allocation5] sm:$0xff] %v509
    // Predicated region
    $region38: #{tpu_custom_call.1} parent=1 // pred_check
      _
    $region39: #{tpu_custom_call.1} parent=1 // pred_check_branch
      %512 = sbr.rel (0) target = $region41
    $region40: #{tpu_custom_call.1} parent=1 // pred_region
      %514 = vsyncadd [#allocation4], 0
      %s516 = sshll.u32 [#allocation5], 4
      %s517 = int_to_ptr.vmem [resolvable:$true] %s516
      %s518 = sshll.u32 %s8, 4
      %s519 = int_to_ptr.hbm [resolvable:$true] %s518
      %521 = dma.vmem_to_hbm [thread:$0]  %s517, 128, %s519, [#allocation4]
    $region41: #{tpu_custom_call.1} parent=1 // pred_fallthru
      _
    // Predicated region
    $region42: #{tpu_custom_call.1} parent=1 // pred_check
      _
    $region43: #{tpu_custom_call.1} parent=1 // pred_check_branch
      %523 = sbr.rel (0) target = $region45
    $region44: #{tpu_custom_call.1} parent=1 // pred_region
      %525 = dma.done [#allocation4], 128
    $region45: #{tpu_custom_call.1} parent=1 // pred_fallthru
      _
    %526 = vsyncpa [#allocation3], 1
    %527 = vsyncpa [#allocation4], 1

</llo_original>
